<compile_context>
chip_gen: v6e
topology: v6e:2x2x1
jax: 0.10.0
libtpu: 0.0.40
codegen_flags: <defaults>
</compile_context>

<pallas_src>
import math
from functools import partial

import jax
import jax.numpy as jnp
from jax.experimental import pallas as pl
from jax.experimental.pallas import tpu as pltpu


# ----------------------------------------------------------------------------
# Fused kernel: 5-way Linear (commuted) + 2x2 propagation hops + bias + ReLU
# ----------------------------------------------------------------------------
def _gcn_kernel(x_ref, a1t_ref, adpt_ref, w_ref, b_ref, out_ref,
                *, tb, vp, c_in, c_out):
    """One grid step = one batch tile of tb examples.

    x_ref   : (tb, Vp, C)      activations (compute dtype, e.g. bf16)
    a1t_ref : (Vp, Vp)         static support, transposed + zero padded (resident)
    adpt_ref: (Vp, Vp)         adaptive support, transposed; softmax done in wrapper
    w_ref   : (C, 5*C_out)     Linear weight re-blocked so column block k == W_k
    b_ref   : (1, C_out)       Linear bias (f32)
    out_ref : (Vp, tb*C_out)   lane-dense output slab
    """
    f32 = jnp.float32
    cdt = x_ref.dtype

    # (tb, Vp, C) -> (tb*Vp, C): leading-dim merge, free because Vp % 8 == 0.
    x2d = x_ref[...].reshape(tb * vp, c_in)

    # MLP first (commuted with the hops): one dense matmul, zero wasted FLOPs.
    y = jnp.dot(x2d, w_ref[...], preferred_element_type=f32)    # (tb*Vp, 5*C_out) f32

    # Bias only rides along with the hop-0 term, so fold it in here (row layout).
    y0 = y[:, 0:c_out] + b_ref[...]

    # Rows (n, v) -> lane-dense slab (Vp, tb*C_out): the one accepted lane relayout.
    # Static slices + concatenate lower unconditionally on Mosaic.
    def to_slab(a2d):
        return jnp.concatenate(
            [a2d[n * vp:(n + 1) * vp, :] for n in range(tb)], axis=1)

    y0s = to_slab(y0)                                            # f32
    y1s = to_slab(y[:, 1 * c_out:2 * c_out])                     # f32 (added, not dotted)
    y2s = to_slab(y[:, 2 * c_out:3 * c_out]).astype(cdt)         # bf16 dot operand
    y3s = to_slab(y[:, 3 * c_out:4 * c_out])                     # f32
    y4s = to_slab(y[:, 4 * c_out:5 * c_out]).astype(cdt)         # bf16 dot operand

    a1 = a1t_ref[...]
    a2 = adpt_ref[...]

    # Order-2 propagation in Horner form: 2 hop matmuls per support, each a lane-dense
    # (Vp, Vp) @ (Vp, tb*C_out) with bf16 operands / f32 accumulation.
    za = jnp.dot(a1,
                 (y1s + jnp.dot(a1, y2s, preferred_element_type=f32)).astype(cdt),
                 preferred_element_type=f32)
    zb = jnp.dot(a2,
                 (y3s + jnp.dot(a2, y4s, preferred_element_type=f32)).astype(cdt),
                 preferred_element_type=f32)

    h = y0s + za + zb
    out_ref[...] = jnp.maximum(h, 0.0).astype(out_ref.dtype)     # ReLU; dropout(p=0) no-op


# ----------------------------------------------------------------------------
# Tiling / VMEM budgeting (per generation)
# ----------------------------------------------------------------------------
def _vmem_capacity_bytes():
    try:
        return int(pltpu.get_tpu_info().vmem_capacity_bytes)
    except Exception:
        return 64 << 20            # conservative (v7x-sized) fallback


def _choose_tile(n, c_in, c_out, vp):
    """Pick batch tile tb and grid length nb.

    Preferences (in order): tb*C_out % 128 == 0 (unmasked lane-dense output stores);
    VMEM usage within ~1/2 of this generation's capacity; lane width <= ~1024;
    an even number of grid steps (v7x: 2 TensorCores share the "parallel" axis).
    """
    t0 = 128 // math.gcd(c_out, 128)      # smallest tb giving a lane-dense output slab

    # rough per-batch-element VMEM footprint (double-buffered blocks + temporaries)
    per_b = vp * (2 * c_in * 2            # x block (bf16), 2 pipeline buffers
                  + 2 * c_out * 4         # out block (f32), 2 pipeline buffers
                  + 5 * c_out * 4         # y (f32)
                  + 5 * c_out * 2         # bf16 hop-operand slabs
                  + 4 * c_out * 4)        # hop temporaries / final sum (f32)
    budget = max(_vmem_capacity_bytes() // 2, 8 << 20)
    cap_tb = max(1, budget // max(per_b, 1))
    cap_tb = min(cap_tb, max(t0, 1024 // max(c_out, 1)))

    if n <= t0:
        return n, 1                       # whole batch in one full-dim block
    tb = max(t0, (min(cap_tb, n) // t0) * t0)
    nb = -(-n // tb)
    if nb * tb - n > max(t0, n // 2):     # avoid absurd batch padding
        return n, 1
    if nb % 2 == 1:                       # prefer an even step count (v7x megacore)
        if nb == 1 and n % 2 == 0 and (n // 2) % t0 == 0:
            tb, nb = n // 2, 2
        elif nb > 1:
            tb_alt = max(t0, ((-(-n // (nb + 1)) + t0 - 1) // t0) * t0)
            nb_alt = -(-n // tb_alt)
            if nb_alt % 2 == 0 and nb_alt * tb_alt - n <= max(t0, n // 2):
                tb, nb = tb_alt, nb_alt
    return tb, nb


# ----------------------------------------------------------------------------
# Wrapper
# ----------------------------------------------------------------------------
def gcn_forward(x, a1t_pad, adpt_pad, w_all, b_row, *, compute_dtype=jnp.bfloat16):
    """x: (N, V, C) -> (N, V, C_out)."""
    n, v, c_in = x.shape
    vp = a1t_pad.shape[0]
    c_out = b_row.shape[-1]

    tb, nb = _choose_tile(n, c_in, c_out, vp)
    n_pad = tb * nb

    xk = x.astype(compute_dtype)
    if vp != v or n_pad != n:
        xk = jnp.pad(xk, ((0, n_pad - n), (0, vp - v), (0, 0)))

    # Explicit VMEM budget: 2x streamed blocks + 2x residents + temporaries + headroom,
    # clamped to ~90% of this generation's physical VMEM (no blanket 32 MiB cap).
    blk_in = tb * vp * c_in * 2
    blk_out = vp * tb * c_out * 4
    resident = 2 * vp * vp * 2 + c_in * 5 * c_out * 2 + c_out * 4
    temps = tb * vp * c_out * (5 * 4 + 5 * 2 + 4 * 4)
    need = 2 * (blk_in + blk_out) + 2 * resident + temps + (4 << 20)
    vmem_limit = int(min(max(need, 16 << 20), int(0.9 * _vmem_capacity_bytes())))

    kernel = partial(_gcn_kernel, tb=tb, vp=vp, c_in=c_in, c_out=c_out)

    hs = pl.pallas_call(
        kernel,
        out_shape=jax.ShapeDtypeStruct((vp, n_pad * c_out), x.dtype),
        grid=(nb,),
        in_specs=[
            pl.BlockSpec((tb, vp, c_in), lambda i: (i, 0, 0)),   # streamed activations
            pl.BlockSpec((vp, vp), lambda i: (0, 0)),            # resident A1^T
            pl.BlockSpec((vp, vp), lambda i: (0, 0)),            # resident adp^T
            pl.BlockSpec((c_in, 5 * c_out), lambda i: (0, 0)),   # resident Linear weight
            pl.BlockSpec((1, c_out), lambda i: (0, 0)),          # resident bias
        ],
        out_specs=pl.BlockSpec((vp, tb * c_out), lambda i: (0, i)),
        compiler_params=pltpu.CompilerParams(
            dimension_semantics=("parallel",),
            vmem_limit_bytes=vmem_limit,
        ),
    )(xk, a1t_pad, adpt_pad, w_all, b_row)

    # Lane-dense slab (Vp, N_pad*C_out) -> (N, V, C_out).
    # TODO(synk): when stacking ConFormer layers, keep the slab layout across layers
    # instead of transposing back to (N, V, C) on every call.
    h = hs.reshape(vp, n_pad, c_out).transpose(1, 0, 2)
    return h[:n, :v, :]


# ----------------------------------------------------------------------------
# Module wrapper (parameters + cached constants)
# ----------------------------------------------------------------------------
class GCNPallas:
    """Pallas port of ConFormer's GCN, specialized to support_len=1, adp=1, order=2."""

    def __init__(self, key, c_in, node_num, supports, adp=1, order=2, dropout=0.0,
                 compute_dtype=jnp.bfloat16):
        assert len(supports) == 1 and adp == 1 and order == 2
        assert dropout == 0.0   # TODO(synk): training-mode dropout not implemented (p=0 -> no-op)
        self.c_in = c_in
        self.c_out = c_in
        self.node_num = node_num
        self.compute_dtype = compute_dtype
        c_cat = (order * (len(supports) + adp) + 1) * c_in      # = 5 * c_in

        k1, k2, k3, k4 = jax.random.split(key, 4)
        # nn.Parameter(torch.randn(...)) equivalents
        self.nodevec1 = jax.random.normal(k1, (node_num, 10), dtype=jnp.float32)
        self.nodevec2 = jax.random.normal(k2, (10, node_num), dtype=jnp.float32)
        # nn.Linear(c_cat, c_out): stored as (c_cat, c_out) so h = cat @ w + b
        bound = 1.0 / math.sqrt(c_cat)
        self.w = jax.random.uniform(k3, (c_cat, self.c_out), jnp.float32, -bound, bound)
        self.b = jax.random.uniform(k4, (self.c_out,), jnp.float32, -bound, bound)

        # ---- constants cached once (no per-forward rebuilds) --------------------
        self.vp = ((node_num + 7) // 8) * 8      # pad V to a sublane multiple
        a1t = jnp.asarray(supports[0], jnp.float32).T
        self.a1t_pad = jnp.zeros((self.vp, self.vp), compute_dtype).at[
            :node_num, :node_num].set(a1t.astype(compute_dtype))
        # Linear weight re-blocked per hop: w_all[:, k*C_out:(k+1)*C_out] = W_k
        self.w_all = jnp.concatenate(
            [self.w[k * c_in:(k + 1) * c_in, :] for k in range(5)], axis=1
        ).astype(compute_dtype)
        self.b_row = self.b.reshape(1, self.c_out).astype(jnp.float32)

    def __call__(self, x):
        # Adaptive support is grid-invariant -> computed once here (hoisted out of the
        # kernel), transposed, and zero-padded AFTER the softmax so the row
        # normalization of the real nodes is unchanged.
        m = jnp.maximum(self.nodevec1 @ self.nodevec2, 0.0)
        adp = jax.nn.softmax(m, axis=1)
        adpt_pad = jnp.zeros((self.vp, self.vp), self.compute_dtype).at[
            :self.node_num, :self.node_num].set(adp.T.astype(self.compute_dtype))
        return gcn_forward(x, self.a1t_pad, adpt_pad, self.w_all, self.b_row,
                           compute_dtype=self.compute_dtype)


# ----------------------------------------------------------------------------
# Pure-JAX reference (f32) for sanity checking
# ----------------------------------------------------------------------------
def gcn_reference(x, a_static, nodevec1, nodevec2, w, b, order=2):
    m = jnp.maximum(nodevec1 @ nodevec2, 0.0)
    adp = jax.nn.softmax(m, axis=1)
    outs = [x]
    for a in (a_static, adp):
        x1 = jnp.einsum("nvc,vw->nwc", x, a)
        outs.append(x1)
        for _ in range(2, order + 1):
            x1 = jnp.einsum("nvc,vw->nwc", x1, a)
            outs.append(x1)
    cat = jnp.concatenate(outs, axis=-1)
    return jnp.maximum(cat @ w + b, 0.0)


if __name__ == "__main__":
    key = jax.random.PRNGKey(0)
    k_x, k_a, k_p = jax.random.split(key, 3)

    N, V, C = 2, 16, 8          # batch, nodes, channels

    x = jax.random.normal(k_x, (N, V, C), dtype=jnp.float32)
    # one static support: random non-negative, row-normalized adjacency
    a_raw = jax.random.uniform(k_a, (V, V), dtype=jnp.float32)
    a_static = a_raw / jnp.sum(a_raw, axis=1, keepdims=True)

    model = GCNPallas(k_p, c_in=C, node_num=V, supports=[a_static])

    h = jax.block_until_ready(model(x))

    h_ref = gcn_reference(x, a_static, model.nodevec1, model.nodevec2,
                          model.w, model.b, order=2)
    assert h.shape == (N, V, C)
    err = float(jnp.max(jnp.abs(h - h_ref)))
    # bf16 matmul operands (f32 accumulation) vs f32 reference -> loosened tolerance
    assert err < 5e-2, err

    print("KERNEL_OK")
</pallas_src>

<mosaic_0001>
module attributes {stable_mosaic.version = 11 : i64} {
  func.func @_gcn_kernel(%arg0: i32, %arg1: memref<2x16x8xbf16, #tpu.memory_space<vmem>>, %arg2: memref<16x16xbf16, #tpu.memory_space<vmem>>, %arg3: memref<16x16xbf16, #tpu.memory_space<vmem>>, %arg4: memref<8x40xbf16, #tpu.memory_space<vmem>>, %arg5: memref<1x8xf32, #tpu.memory_space<vmem>>, %arg6: memref<16x16xf32, #tpu.memory_space<vmem>>) attributes {dimension_semantics = [#tpu.dimension_semantics<parallel>], iteration_bounds = array<i64: 1>, scalar_prefetch = 0 : i64, scratch_operands = 0 : i64, tpu.core_type = #tpu.core_type<tc>, window_params = [{transform_indices = @transform_0, window_bounds = array<i64: 2, 16, 8>}, {pipeline_mode = #tpu.pipeline_mode<synchronous>, transform_indices = @transform_1, window_bounds = array<i64: 16, 16>}, {pipeline_mode = #tpu.pipeline_mode<synchronous>, transform_indices = @transform_2, window_bounds = array<i64: 16, 16>}, {pipeline_mode = #tpu.pipeline_mode<synchronous>, transform_indices = @transform_3, window_bounds = array<i64: 8, 40>}, {pipeline_mode = #tpu.pipeline_mode<synchronous>, transform_indices = @transform_4, window_bounds = array<i64: 1, 8>}, {transform_indices = @transform_5, window_bounds = array<i64: 16, 16>}]} {
    %c0 = arith.constant 0 : index
    %c0_0 = arith.constant 0 : index
    %c0_1 = arith.constant 0 : index
    %0 = vector.load %arg1[%c0, %c0_0, %c0_1] : memref<2x16x8xbf16, #tpu.memory_space<vmem>>, vector<2x16x8xbf16>
    %1 = vector.shape_cast %0 : vector<2x16x8xbf16> to vector<32x8xbf16>
    %c0_2 = arith.constant 0 : index
    %c0_3 = arith.constant 0 : index
    %2 = vector.load %arg4[%c0_2, %c0_3] : memref<8x40xbf16, #tpu.memory_space<vmem>>, vector<8x40xbf16>
    %cst = arith.constant dense<0.000000e+00> : vector<32x40xf32>
    %3 = tpu.matmul %1, %2, %cst {dimension_numbers = #tpu.dot_dimension_numbers<[1], [0], [0], [1], [0, 0, 1, 1], [], []>} : vector<32x8xbf16>, vector<8x40xbf16>, vector<32x40xf32> -> vector<32x40xf32>
    %4 = vector.extract_strided_slice %3 {offsets = [0, 0], sizes = [32, 8], strides = [1, 1]} : vector<32x40xf32> to vector<32x8xf32>
    %c0_4 = arith.constant 0 : index
    %c0_5 = arith.constant 0 : index
    %5 = vector.load %arg5[%c0_4, %c0_5] : memref<1x8xf32, #tpu.memory_space<vmem>>, vector<1x8xf32>
    %6 = vector.broadcast %5 : vector<1x8xf32> to vector<32x8xf32>
    %7 = arith.addf %4, %6 : vector<32x8xf32>
    %8 = vector.extract_strided_slice %7 {offsets = [0, 0], sizes = [16, 8], strides = [1, 1]} : vector<32x8xf32> to vector<16x8xf32>
    %9 = vector.extract_strided_slice %7 {offsets = [16, 0], sizes = [16, 8], strides = [1, 1]} : vector<32x8xf32> to vector<16x8xf32>
    %10 = tpu.concatenate %8, %9 in 1 : vector<16x8xf32>, vector<16x8xf32> -> vector<16x16xf32>
    %11 = vector.extract_strided_slice %3 {offsets = [0, 8], sizes = [32, 8], strides = [1, 1]} : vector<32x40xf32> to vector<32x8xf32>
    %12 = vector.extract_strided_slice %11 {offsets = [0, 0], sizes = [16, 8], strides = [1, 1]} : vector<32x8xf32> to vector<16x8xf32>
    %13 = vector.extract_strided_slice %11 {offsets = [16, 0], sizes = [16, 8], strides = [1, 1]} : vector<32x8xf32> to vector<16x8xf32>
    %14 = tpu.concatenate %12, %13 in 1 : vector<16x8xf32>, vector<16x8xf32> -> vector<16x16xf32>
    %15 = vector.extract_strided_slice %3 {offsets = [0, 16], sizes = [32, 8], strides = [1, 1]} : vector<32x40xf32> to vector<32x8xf32>
    %16 = vector.extract_strided_slice %15 {offsets = [0, 0], sizes = [16, 8], strides = [1, 1]} : vector<32x8xf32> to vector<16x8xf32>
    %17 = vector.extract_strided_slice %15 {offsets = [16, 0], sizes = [16, 8], strides = [1, 1]} : vector<32x8xf32> to vector<16x8xf32>
    %18 = tpu.concatenate %16, %17 in 1 : vector<16x8xf32>, vector<16x8xf32> -> vector<16x16xf32>
    %19 = arith.truncf %18 : vector<16x16xf32> to vector<16x16xbf16>
    %20 = vector.extract_strided_slice %3 {offsets = [0, 24], sizes = [32, 8], strides = [1, 1]} : vector<32x40xf32> to vector<32x8xf32>
    %21 = vector.extract_strided_slice %20 {offsets = [0, 0], sizes = [16, 8], strides = [1, 1]} : vector<32x8xf32> to vector<16x8xf32>
    %22 = vector.extract_strided_slice %20 {offsets = [16, 0], sizes = [16, 8], strides = [1, 1]} : vector<32x8xf32> to vector<16x8xf32>
    %23 = tpu.concatenate %21, %22 in 1 : vector<16x8xf32>, vector<16x8xf32> -> vector<16x16xf32>
    %24 = vector.extract_strided_slice %3 {offsets = [0, 32], sizes = [32, 8], strides = [1, 1]} : vector<32x40xf32> to vector<32x8xf32>
    %25 = vector.extract_strided_slice %24 {offsets = [0, 0], sizes = [16, 8], strides = [1, 1]} : vector<32x8xf32> to vector<16x8xf32>
    %26 = vector.extract_strided_slice %24 {offsets = [16, 0], sizes = [16, 8], strides = [1, 1]} : vector<32x8xf32> to vector<16x8xf32>
    %27 = tpu.concatenate %25, %26 in 1 : vector<16x8xf32>, vector<16x8xf32> -> vector<16x16xf32>
    %28 = arith.truncf %27 : vector<16x16xf32> to vector<16x16xbf16>
    %c0_6 = arith.constant 0 : index
    %c0_7 = arith.constant 0 : index
    %29 = vector.load %arg2[%c0_6, %c0_7] : memref<16x16xbf16, #tpu.memory_space<vmem>>, vector<16x16xbf16>
    %c0_8 = arith.constant 0 : index
    %c0_9 = arith.constant 0 : index
    %30 = vector.load %arg3[%c0_8, %c0_9] : memref<16x16xbf16, #tpu.memory_space<vmem>>, vector<16x16xbf16>
    %cst_10 = arith.constant dense<0.000000e+00> : vector<16x16xf32>
    %31 = tpu.matmul %29, %19, %cst_10 {dimension_numbers = #tpu.dot_dimension_numbers<[1], [0], [0], [1], [0, 0, 1, 1], [], []>} : vector<16x16xbf16>, vector<16x16xbf16>, vector<16x16xf32> -> vector<16x16xf32>
    %32 = arith.addf %14, %31 : vector<16x16xf32>
    %33 = arith.truncf %32 : vector<16x16xf32> to vector<16x16xbf16>
    %cst_11 = arith.constant dense<0.000000e+00> : vector<16x16xf32>
    %34 = tpu.matmul %29, %33, %cst_11 {dimension_numbers = #tpu.dot_dimension_numbers<[1], [0], [0], [1], [0, 0, 1, 1], [], []>} : vector<16x16xbf16>, vector<16x16xbf16>, vector<16x16xf32> -> vector<16x16xf32>
    %cst_12 = arith.constant dense<0.000000e+00> : vector<16x16xf32>
    %35 = tpu.matmul %30, %28, %cst_12 {dimension_numbers = #tpu.dot_dimension_numbers<[1], [0], [0], [1], [0, 0, 1, 1], [], []>} : vector<16x16xbf16>, vector<16x16xbf16>, vector<16x16xf32> -> vector<16x16xf32>
    %36 = arith.addf %23, %35 : vector<16x16xf32>
    %37 = arith.truncf %36 : vector<16x16xf32> to vector<16x16xbf16>
    %cst_13 = arith.constant dense<0.000000e+00> : vector<16x16xf32>
    %38 = tpu.matmul %30, %37, %cst_13 {dimension_numbers = #tpu.dot_dimension_numbers<[1], [0], [0], [1], [0, 0, 1, 1], [], []>} : vector<16x16xbf16>, vector<16x16xbf16>, vector<16x16xf32> -> vector<16x16xf32>
    %39 = arith.addf %10, %34 : vector<16x16xf32>
    %40 = arith.addf %39, %38 : vector<16x16xf32>
    %cst_14 = arith.constant 0.000000e+00 : f32
    %41 = vector.broadcast %cst_14 : f32 to vector<16x16xf32>
    %42 = arith.maximumf %40, %41 : vector<16x16xf32>
    %c0_15 = arith.constant 0 : index
    %c0_16 = arith.constant 0 : index
    %43 = vector.load %arg6[%c0_15, %c0_16] : memref<16x16xf32, #tpu.memory_space<vmem>>, vector<16x16xf32>
    tpu.vector_store %arg6[%c0_15, %c0_16], %42 {strides = array<i32>} : memref<16x16xf32, #tpu.memory_space<vmem>>, vector<16x16xf32>,
    return
  }
  func.func @transform_0(%arg0: i32) -> (i32, i32, i32) {
    %c0_i32 = arith.constant 0 : i32
    %c0_i32_0 = arith.constant 0 : i32
    %c0_i32_1 = arith.constant 0 : i32
    return %arg0, %c0_i32, %c0_i32_0 : i32, i32, i32
  }
  func.func @transform_1(%arg0: i32) -> (i32, i32) {
    %c0_i32 = arith.constant 0 : i32
    %c0_i32_0 = arith.constant 0 : i32
    %c0_i32_1 = arith.constant 0 : i32
    return %c0_i32, %c0_i32_0 : i32, i32
  }
  func.func @transform_2(%arg0: i32) -> (i32, i32) {
    %c0_i32 = arith.constant 0 : i32
    %c0_i32_0 = arith.constant 0 : i32
    %c0_i32_1 = arith.constant 0 : i32
    return %c0_i32, %c0_i32_0 : i32, i32
  }
  func.func @transform_3(%arg0: i32) -> (i32, i32) {
    %c0_i32 = arith.constant 0 : i32
    %c0_i32_0 = arith.constant 0 : i32
    %c0_i32_1 = arith.constant 0 : i32
    return %c0_i32, %c0_i32_0 : i32, i32
  }
  func.func @transform_4(%arg0: i32) -> (i32, i32) {
    %c0_i32 = arith.constant 0 : i32
    %c0_i32_0 = arith.constant 0 : i32
    %c0_i32_1 = arith.constant 0 : i32
    return %c0_i32, %c0_i32_0 : i32, i32
  }
  func.func @transform_5(%arg0: i32) -> (i32, i32) {
    %c0_i32 = arith.constant 0 : i32
    %c0_i32_0 = arith.constant 0 : i32
    return %c0_i32, %arg0 : i32, i32
  }
}

</mosaic_0001>

<llo_original>
// kernel: tpu_custom_call.1
$region0: #{tpu_custom_call.1}
  #allocation0 [shape = 'u32[]', space=smem, size = 0x4, offset = 0x4, fixed_abs, tag = 'smem constant byte address 0x4 - core index']
  #allocation1 [shape = 'u32[144,128]{1,0:T(1,128)}', space=vmem, size = 0x12000, scoped, tag = 'internal scratch']
  %s0 = inlined_call_operand.vmem [shape: bf16[2,16,8], index: 0, kind: input, shape index: {}]
  %s1 = inlined_call_operand.vmem [shape: bf16[16,16], index: 1, kind: input, shape index: {}]
  %s2 = inlined_call_operand.vmem [shape: bf16[16,16], index: 2, kind: input, shape index: {}]
  %s3 = inlined_call_operand.vmem [shape: bf16[8,40], index: 3, kind: input, shape index: {}]
  %s4 = inlined_call_operand.vmem [shape: f32[1,8], index: 4, kind: input, shape index: {}]
  %s5 = inlined_call_operand.hbm [shape: f32[16,16], index: 5, kind: output, shape index: {}]
  %s6 = sld [smem:[#allocation0]]
  $region30: #{tpu_custom_call.1} parent=0
    _
  %s8 = ssub.s32 1, %s6
  %s9 = scalar_select 0, %s8, %s6
  $region1: #{tpu_custom_call.1} parent=0
    #allocation2 [shape = 'u8[8192]{0}', space=vmem, size = 0x2000, scoped, tag = 'output window, operand 0, single buffered']
    #allocation3 [shape = 's32[1]{0}', space=sflag, size = 0x4, scoped, tag = 'scoped memory for tpu_custom_call.1']
    %10 = vsyncpa [#allocation3], 0
    // Predicated region
    $region2: #{tpu_custom_call.1} parent=1 // pred_check
      _
    $region3: #{tpu_custom_call.1} parent=1 // pred_check_branch
      %12 = sbr.rel (0) target = $region5
    $region4: #{tpu_custom_call.1} parent=1 // pred_region
      _
    $region5: #{tpu_custom_call.1} parent=1 // pred_fallthru
      _
    // Predicated region
    $region6: #{tpu_custom_call.1} parent=1 // pred_check
      _
    $region7: #{tpu_custom_call.1} parent=1 // pred_check_branch
      %14 = sbr.rel (0) target = $region9
    $region8: #{tpu_custom_call.1} parent=1 // pred_region
      _
    $region9: #{tpu_custom_call.1} parent=1 // pred_fallthru
      _
    // Predicated region
    $region10: #{tpu_custom_call.1} parent=1 // pred_check
      _
    $region11: #{tpu_custom_call.1} parent=1 // pred_check_branch
      %16 = sbr.rel (0) target = $region13
    $region12: #{tpu_custom_call.1} parent=1 // pred_region
      _
    $region13: #{tpu_custom_call.1} parent=1 // pred_fallthru
      _
    // Predicated region
    $region14: #{tpu_custom_call.1} parent=1 // pred_check
      _
    $region15: #{tpu_custom_call.1} parent=1 // pred_check_branch
      %18 = sbr.rel (0) target = $region17
    $region16: #{tpu_custom_call.1} parent=1 // pred_region
      _
    $region17: #{tpu_custom_call.1} parent=1 // pred_fallthru
      _
    // Predicated region
    $region18: #{tpu_custom_call.1} parent=1 // pred_check
      _
    $region19: #{tpu_custom_call.1} parent=1 // pred_check_branch
      %20 = sbr.rel (0) target = $region21
    $region20: #{tpu_custom_call.1} parent=1 // pred_region
      _
    $region21: #{tpu_custom_call.1} parent=1 // pred_fallthru
      _
    %v22 = vld [vmem:[%s0] sm:$0xf]
    %v23 = vld [vmem:[%s0 + $0x4] sm:$0xf]
    %v24 = vld [vmem:[%s0 + $0x8] sm:$0xf]
    %v25 = vld [vmem:[%s0 + $0xc] sm:$0xf]
    %v26 = vld [vmem:[%s3] sm:$0xf]
    %v31 = vunpack.c.l.b16 %v22
    %v32 = vunpack.c.l.b16 %v23
    %v33 = vunpack.c.l.b16 %v24
    %v34 = vunpack.c.l.b16 %v25
    %v35 = vpack.c.b16 %v32, %v31
    %v36 = vpack.c.b16 %v34, %v33
    %vm37 = vcmask 64512
    %v39 = vsel %vm37, %v35, 0
    %v42 = vsel %vm37, %v36, 0
    %vm44 = vcmask 1043456
    %v46 = vsel %vm44, %v26, 0
    %48 = vmatprep.subr.bf16.mxu0 0
    %49 = vmatpush1.bf16.msra.mxu0 0
    %50 = vmatprep.subr.bf16.mxu0 0
    %51 = vmatpush1.bf16.msra.mxu0 0
    %52 = vmatprep.subr.bf16.mxu0 0
    %53 = vmatpush1.bf16.msra.mxu0 0
    %54 = vmatprep.subr.bf16.mxu0 0
    %55 = vmatpush1.bf16.msra.mxu0 0
    %56 = vmatprep.subr.bf16.mxu0 0
    %57 = vmatpush1.bf16.msra.mxu0 0
    %58 = vmatprep.subr.bf16.mxu0 0
    %59 = vmatpush1.bf16.msra.mxu0 0
    %60 = vmatprep.subr.bf16.mxu0 0
    %61 = vmatpush1.bf16.msra.mxu0 0
    %62 = vmatprep.subr.bf16.mxu0 0
    %63 = vmatpush1.bf16.msra.mxu0 %v46
    %64 = vmatprep.subr.bf16.mxu0 0
    %65 = vmatpush2.bf16.msra.mxu0 0
    %66 = vmatprep.subr.bf16.mxu0 0
    %67 = vmatpush2.bf16.msra.mxu0 0
    %68 = vmatprep.subr.bf16.mxu0 0
    %69 = vmatpush2.bf16.msra.mxu0 0
    %70 = vmatprep.subr.bf16.mxu0 0
    %71 = vmatpush2.bf16.msra.mxu0 0
    %72 = vmatprep.subr.bf16.mxu0 0
    %73 = vmatpush2.bf16.msra.mxu0 0
    %74 = vmatprep.subr.bf16.mxu0 0
    %75 = vmatpush2.bf16.msra.mxu0 0
    %76 = vmatprep.subr.bf16.mxu0 0
    %77 = vmatpush2.bf16.msra.mxu0 0
    %78 = vmatprep.subr.bf16.mxu0 0
    %79 = vmatpush2.bf16.msra.mxu0 0
    %80 = vmatprep.mubr.bf16.mxu0 0
    %81 = vmatmul.mubr.bf16.gmra.mxu0 %v39
    %v82 = vpop.f32.mrf.mxu0
    %v83 = vadd.f32 0.0, %v82
    %v84 = vpop.f32.mrf.mxu0
    %v85 = vpop.f32.mrf.mxu0
    %v86 = vadd.f32 0.0, %v85
    %v87 = vpop.f32.mrf.mxu0
    %88 = vmatprep.mubr.bf16.mxu0 0
    %89 = vmatmul.mubr.bf16.gmra.mxu0 %v42
    %v90 = vpop.f32.mrf.mxu0
    %v91 = vadd.f32 0.0, %v90
    %v92 = vpop.f32.mrf.mxu0
    %v93 = vpop.f32.mrf.mxu0
    %v94 = vadd.f32 0.0, %v93
    %v95 = vpop.f32.mrf.mxu0
    %96 = vdwg.mxu0
    %v97 = vld [vmem:[%s4] sm:$0x1]
    %v99 = vlaneseq
    %v100 = vshrl.u32 %v99, 7
    %v101 = vsub.s32 0, %v100
    %v102 = vrot.slane %v97, %v101
    %v104 = vadd.f32 %v83, %v102
    %v105 = vadd.f32 %v86, %v102
    %v106 = vadd.f32 %v91, %v102
    %v107 = vadd.f32 %v94, %v102
    %110 = vrot.lane.b32.xlu0 %v106, 8
    %v111 = vpop.permute.xlu0 %110
    %112 = vrot.lane.b32.xlu0 %v107, 8
    %v113 = vpop.permute.xlu0 %112
    %v116 = vsel %vm37, %v104, %v111
    %v117 = vsel %vm37, %v105, %v113
    %120 = vrot.lane.b32.xlu0 %v83, 120
    %v121 = vpop.permute.xlu0 %120
    %122 = vrot.lane.b32.xlu0 %v86, 120
    %v123 = vpop.permute.xlu0 %122
    %v126 = vsel %vm37, %v121, %v91
    %v127 = vsel %vm37, %v123, %v94
    %128 = vrot.lane.b32.xlu0 %v83, 112
    %v129 = vpop.permute.xlu0 %128
    %130 = vrot.lane.b32.xlu0 %v86, 112
    %v131 = vpop.permute.xlu0 %130
    %136 = vrot.lane.b32.xlu0 %v91, 120
    %v137 = vpop.permute.xlu0 %136
    %138 = vrot.lane.b32.xlu0 %v94, 120
    %v139 = vpop.permute.xlu0 %138
    %v142 = vsel %vm37, %v129, %v137
    %v143 = vsel %vm37, %v131, %v139
    %v144 = vpack.c.bf16 %v143, %v142
    %145 = vrot.lane.b32.xlu0 %v83, 104
    %v146 = vpop.permute.xlu0 %145
    %147 = vrot.lane.b32.xlu0 %v86, 104
    %v148 = vpop.permute.xlu0 %147
    %151 = vrot.lane.b32.xlu0 %v91, 112
    %v152 = vpop.permute.xlu0 %151
    %153 = vrot.lane.b32.xlu0 %v94, 112
    %v154 = vpop.permute.xlu0 %153
    %v157 = vsel %vm37, %v146, %v152
    %v158 = vsel %vm37, %v148, %v154
    %159 = vrot.lane.b32.xlu0 %v83, 96
    %v160 = vpop.permute.xlu0 %159
    %161 = vrot.lane.b32.xlu0 %v86, 96
    %v162 = vpop.permute.xlu0 %161
    %165 = vrot.lane.b32.xlu0 %v91, 104
    %v166 = vpop.permute.xlu0 %165
    %167 = vrot.lane.b32.xlu0 %v94, 104
    %v168 = vpop.permute.xlu0 %167
    %v171 = vsel %vm37, %v160, %v166
    %v172 = vsel %vm37, %v162, %v168
    %v173 = vpack.c.bf16 %v172, %v171
    %v174 = vld [vmem:[%s1] sm:$0xf]
    %v175 = vld [vmem:[%s1 + $0x4] sm:$0xf]
    %v176 = vld [vmem:[%s2] sm:$0xf]
    %v177 = vld [vmem:[%s2 + $0x4] sm:$0xf]
    %v180 = vunpack.c.l.b16 %v174
    %v181 = vunpack.c.l.b16 %v175
    %v182 = vpack.c.b16 %v181, %v180
    %vm183 = vcmask 130048
    %v185 = vsel %vm183, %v182, 0
    %187 = vmatprep.subr.bf16.mxu0 0
    %188 = vmatpush1.bf16.msra.mxu0 0
    %189 = vmatprep.subr.bf16.mxu0 0
    %190 = vmatpush1.bf16.msra.mxu0 0
    %191 = vmatprep.subr.bf16.mxu0 0
    %192 = vmatpush1.bf16.msra.mxu0 0
    %193 = vmatprep.subr.bf16.mxu0 0
    %194 = vmatpush1.bf16.msra.mxu0 0
    %195 = vmatprep.subr.bf16.mxu0 0
    %196 = vmatpush1.bf16.msra.mxu0 0
    %197 = vmatprep.subr.bf16.mxu0 0
    %198 = vmatpush1.bf16.msra.mxu0 0
    %199 = vmatprep.subr.bf16.mxu0 0
    %200 = vmatpush1.bf16.msra.mxu0 0
    %201 = vmatprep.subr.bf16.mxu0 0
    %202 = vmatpush1.bf16.msra.mxu0 %v144
    %203 = vmatprep.subr.bf16.mxu0 0
    %204 = vmatpush2.bf16.msra.mxu0 0
    %205 = vmatprep.subr.bf16.mxu0 0
    %206 = vmatpush2.bf16.msra.mxu0 0
    %207 = vmatprep.subr.bf16.mxu0 0
    %208 = vmatpush2.bf16.msra.mxu0 0
    %209 = vmatprep.subr.bf16.mxu0 0
    %210 = vmatpush2.bf16.msra.mxu0 0
    %211 = vmatprep.subr.bf16.mxu0 0
    %212 = vmatpush2.bf16.msra.mxu0 0
    %213 = vmatprep.subr.bf16.mxu0 0
    %214 = vmatpush2.bf16.msra.mxu0 0
    %215 = vmatprep.subr.bf16.mxu0 0
    %216 = vmatpush2.bf16.msra.mxu0 0
    %217 = vmatprep.subr.bf16.mxu0 0
    %218 = vmatpush2.bf16.msra.mxu0 0
    %219 = vmatprep.mubr.bf16.mxu0 0
    %220 = vmatmul.mubr.bf16.gmra.mxu0 %v185
    %v221 = vpop.f32.mrf.mxu0
    %v222 = vadd.f32 0.0, %v221
    %v223 = vpop.f32.mrf.mxu0
    %v224 = vpop.f32.mrf.mxu0
    %v225 = vadd.f32 0.0, %v224
    %v226 = vpop.f32.mrf.mxu0
    %227 = vdwg.mxu0
    %v228 = vadd.f32 %v126, %v222
    %v229 = vadd.f32 %v127, %v225
    %v230 = vpack.c.bf16 %v229, %v228
    %231 = vmatprep.subr.bf16.mxu0 0
    %232 = vmatpush1.bf16.msra.mxu0 0
    %233 = vmatprep.subr.bf16.mxu0 0
    %234 = vmatpush1.bf16.msra.mxu0 0
    %235 = vmatprep.subr.bf16.mxu0 0
    %236 = vmatpush1.bf16.msra.mxu0 0
    %237 = vmatprep.subr.bf16.mxu0 0
    %238 = vmatpush1.bf16.msra.mxu0 0
    %239 = vmatprep.subr.bf16.mxu0 0
    %240 = vmatpush1.bf16.msra.mxu0 0
    %241 = vmatprep.subr.bf16.mxu0 0
    %242 = vmatpush1.bf16.msra.mxu0 0
    %243 = vmatprep.subr.bf16.mxu0 0
    %244 = vmatpush1.bf16.msra.mxu0 0
    %245 = vmatprep.subr.bf16.mxu0 0
    %246 = vmatpush1.bf16.msra.mxu0 %v230
    %247 = vmatprep.subr.bf16.mxu0 0
    %248 = vmatpush2.bf16.msra.mxu0 0
    %249 = vmatprep.subr.bf16.mxu0 0
    %250 = vmatpush2.bf16.msra.mxu0 0
    %251 = vmatprep.subr.bf16.mxu0 0
    %252 = vmatpush2.bf16.msra.mxu0 0
    %253 = vmatprep.subr.bf16.mxu0 0
    %254 = vmatpush2.bf16.msra.mxu0 0
    %255 = vmatprep.subr.bf16.mxu0 0
    %256 = vmatpush2.bf16.msra.mxu0 0
    %257 = vmatprep.subr.bf16.mxu0 0
    %258 = vmatpush2.bf16.msra.mxu0 0
    %259 = vmatprep.subr.bf16.mxu0 0
    %260 = vmatpush2.bf16.msra.mxu0 0
    %261 = vmatprep.subr.bf16.mxu0 0
    %262 = vmatpush2.bf16.msra.mxu0 0
    %263 = vmatprep.mubr.bf16.mxu0 0
    %264 = vmatmul.mubr.bf16.gmra.mxu0 %v185
    %v265 = vpop.f32.mrf.mxu0
    %v266 = vadd.f32 0.0, %v265
    %v267 = vpop.f32.mrf.mxu0
    %v268 = vpop.f32.mrf.mxu0
    %v269 = vadd.f32 0.0, %v268
    %v270 = vpop.f32.mrf.mxu0
    %271 = vdwg.mxu0
    %v274 = vunpack.c.l.b16 %v176
    %v275 = vunpack.c.l.b16 %v177
    %v276 = vpack.c.b16 %v275, %v274
    %v278 = vsel %vm183, %v276, 0
    %280 = vmatprep.subr.bf16.mxu0 0
    %281 = vmatpush1.bf16.msra.mxu0 0
    %282 = vmatprep.subr.bf16.mxu0 0
    %283 = vmatpush1.bf16.msra.mxu0 0
    %284 = vmatprep.subr.bf16.mxu0 0
    %285 = vmatpush1.bf16.msra.mxu0 0
    %286 = vmatprep.subr.bf16.mxu0 0
    %287 = vmatpush1.bf16.msra.mxu0 0
    %288 = vmatprep.subr.bf16.mxu0 0
    %289 = vmatpush1.bf16.msra.mxu0 0
    %290 = vmatprep.subr.bf16.mxu0 0
    %291 = vmatpush1.bf16.msra.mxu0 0
    %292 = vmatprep.subr.bf16.mxu0 0
    %293 = vmatpush1.bf16.msra.mxu0 0
    %294 = vmatprep.subr.bf16.mxu0 0
    %295 = vmatpush1.bf16.msra.mxu0 %v173
    %296 = vmatprep.subr.bf16.mxu0 0
    %297 = vmatpush2.bf16.msra.mxu0 0
    %298 = vmatprep.subr.bf16.mxu0 0
    %299 = vmatpush2.bf16.msra.mxu0 0
    %300 = vmatprep.subr.bf16.mxu0 0
    %301 = vmatpush2.bf16.msra.mxu0 0
    %302 = vmatprep.subr.bf16.mxu0 0
    %303 = vmatpush2.bf16.msra.mxu0 0
    %304 = vmatprep.subr.bf16.mxu0 0
    %305 = vmatpush2.bf16.msra.mxu0 0
    %306 = vmatprep.subr.bf16.mxu0 0
    %307 = vmatpush2.bf16.msra.mxu0 0
    %308 = vmatprep.subr.bf16.mxu0 0
    %309 = vmatpush2.bf16.msra.mxu0 0
    %310 = vmatprep.subr.bf16.mxu0 0
    %311 = vmatpush2.bf16.msra.mxu0 0
    %312 = vmatprep.mubr.bf16.mxu0 0
    %313 = vmatmul.mubr.bf16.gmra.mxu0 %v278
    %v314 = vpop.f32.mrf.mxu0
    %v315 = vadd.f32 0.0, %v314
    %v316 = vpop.f32.mrf.mxu0
    %v317 = vpop.f32.mrf.mxu0
    %v318 = vadd.f32 0.0, %v317
    %v319 = vpop.f32.mrf.mxu0
    %320 = vdwg.mxu0
    %v321 = vadd.f32 %v157, %v315
    %v322 = vadd.f32 %v158, %v318
    %v323 = vpack.c.bf16 %v322, %v321
    %324 = vmatprep.subr.bf16.mxu0 0
    %325 = vmatpush1.bf16.msra.mxu0 0
    %326 = vmatprep.subr.bf16.mxu0 0
    %327 = vmatpush1.bf16.msra.mxu0 0
    %328 = vmatprep.subr.bf16.mxu0 0
    %329 = vmatpush1.bf16.msra.mxu0 0
    %330 = vmatprep.subr.bf16.mxu0 0
    %331 = vmatpush1.bf16.msra.mxu0 0
    %332 = vmatprep.subr.bf16.mxu0 0
    %333 = vmatpush1.bf16.msra.mxu0 0
    %334 = vmatprep.subr.bf16.mxu0 0
    %335 = vmatpush1.bf16.msra.mxu0 0
    %336 = vmatprep.subr.bf16.mxu0 0
    %337 = vmatpush1.bf16.msra.mxu0 0
    %338 = vmatprep.subr.bf16.mxu0 0
    %339 = vmatpush1.bf16.msra.mxu0 %v323
    %340 = vmatprep.subr.bf16.mxu0 0
    %341 = vmatpush2.bf16.msra.mxu0 0
    %342 = vmatprep.subr.bf16.mxu0 0
    %343 = vmatpush2.bf16.msra.mxu0 0
    %344 = vmatprep.subr.bf16.mxu0 0
    %345 = vmatpush2.bf16.msra.mxu0 0
    %346 = vmatprep.subr.bf16.mxu0 0
    %347 = vmatpush2.bf16.msra.mxu0 0
    %348 = vmatprep.subr.bf16.mxu0 0
    %349 = vmatpush2.bf16.msra.mxu0 0
    %350 = vmatprep.subr.bf16.mxu0 0
    %351 = vmatpush2.bf16.msra.mxu0 0
    %352 = vmatprep.subr.bf16.mxu0 0
    %353 = vmatpush2.bf16.msra.mxu0 0
    %354 = vmatprep.subr.bf16.mxu0 0
    %355 = vmatpush2.bf16.msra.mxu0 0
    %356 = vmatprep.mubr.bf16.mxu0 0
    %357 = vmatmul.mubr.bf16.gmra.mxu0 %v278
    %v358 = vpop.f32.mrf.mxu0
    %v359 = vadd.f32 0.0, %v358
    %v360 = vpop.f32.mrf.mxu0
    %v361 = vpop.f32.mrf.mxu0
    %v362 = vadd.f32 0.0, %v361
    %v363 = vpop.f32.mrf.mxu0
    %364 = vdwg.mxu0
    %v365 = vadd.f32 %v116, %v266
    %v366 = vadd.f32 %v117, %v269
    %v367 = vadd.f32 %v365, %v359
    %v368 = vadd.f32 %v366, %v362
    %v369 = vmax.f32 %v367, 0.0
    %v370 = vmax.f32 %v368, 0.0
    %371 = vst.msk [vmem:[#allocation2] sm:$0xff] %vm183, %v369
    %372 = vst.msk [vmem:[#allocation2 + $0x8] sm:$0xff] %vm183, %v370
    // Predicated region
    $region22: #{tpu_custom_call.1} parent=1 // pred_check
      _
    $region23: #{tpu_custom_call.1} parent=1 // pred_check_branch
      %374 = sbr.rel (0) target = $region25
    $region24: #{tpu_custom_call.1} parent=1 // pred_region
      %s376 = ssub.s32 256, 256
      %377 = vsyncadd [#allocation3], %s376
      %s378 = sshll.u32 [#allocation2], 4
      %s379 = int_to_ptr.vmem [resolvable:$true] %s378
      %384 = dma.vmem_to_hbm [thread:$0]  %s379, 256, %s5, [#allocation3], 128, 128, 8
    $region25: #{tpu_custom_call.1} parent=1 // pred_fallthru
      _
    // Predicated region
    $region26: #{tpu_custom_call.1} parent=1 // pred_check
      _
    $region27: #{tpu_custom_call.1} parent=1 // pred_check_branch
      %386 = sbr.rel (0) target = $region29
    $region28: #{tpu_custom_call.1} parent=1 // pred_region
      %387 = dma.done [#allocation3], 256
    $region29: #{tpu_custom_call.1} parent=1 // pred_fallthru
      _
    %388 = vsyncpa [#allocation3], 1

</llo_original>
